<compile_context>
chip_gen: v5e
topology: v5e:2x2
jax: 0.10.0
libtpu: 0.0.40
codegen_flags: <defaults>
</compile_context>

<pallas_src>
import math

import jax
import jax.numpy as jnp
from jax.experimental import pallas as pl
from jax.experimental.pallas import tpu as pltpu


def build_pe_table(max_len: int, d_model: int, dtype=jnp.float32) -> jnp.ndarray:
    """Sinusoidal positional-encoding table [max_len, d_model] (assumes even d_model,
    same latent assumption as the PyTorch original). Computed in f32, cast at the end."""
    position = jnp.arange(0, max_len, dtype=jnp.float32)[:, None]              # [L, 1]
    div_term = jnp.exp(
        jnp.arange(0, d_model, 2, dtype=jnp.float32) * -(math.log(10000.0) / d_model)
    )                                                                           # [D/2]
    pe = jnp.zeros((max_len, d_model), dtype=jnp.float32)
    pe = pe.at[:, 0::2].set(jnp.sin(position * div_term))
    pe = pe.at[:, 1::2].set(jnp.cos(position * div_term))
    return pe.astype(dtype)


def _pe_add_kernel(x_ref, pe_ref, o_ref):
    # x_ref : (bb, ts, d) tile,  pe_ref : (ts, d) tile -> implicit broadcast over batch.
    # Compute in f32 (free in a mem-bound kernel; v5e has no bf16 VALU) but keep
    # HBM traffic in the input dtype.
    x = x_ref[...].astype(jnp.float32)
    p = pe_ref[...].astype(jnp.float32)
    o_ref[...] = (x + p).astype(o_ref.dtype)


_TINY_BYTES = 2 * 1024 * 1024          # below this, use a single block (no grid overhead)
_TARGET_TILE_BYTES = 2 * 1024 * 1024   # ~2 MiB x tiles: ~85% of HBM roofline territory,
                                       # and 3 arrays x 2 buffers x 2 MiB fits default
                                       # scoped VMEM on v5e (16 MiB) / v6e / v7x (32 MiB).


def positional_encoding_forward(x: jnp.ndarray, pe: jnp.ndarray) -> jnp.ndarray:
    """x: [B, S, D]; pe: [max_len, D].  Returns x + pe[:S] (eval-mode dropout)."""
    B, S, D = x.shape
    pe_slice = pe[:S, :].astype(x.dtype)   # static slice + dtype match: glue

    # TODO(synk): nn.Dropout in training mode (random mask + 1/(1-p) scaling) is not
    # reproduced here; eval-mode dropout is the identity.

    # --- lane-dense fold: make the last (lane) dim a multiple of 128 when possible ---
    k = 1
    if D % 128 != 0:
        cand = 128 // math.gcd(D, 128)     # smallest k with (k*D) % 128 == 0
        if S % cand == 0:
            k = cand
    S2, D2 = S // k, D * k
    x2 = x.reshape(B, S2, D2)              # pure layout plumbing; add is unchanged
    pe2 = pe_slice.reshape(S2, D2)

    itemsize = jnp.dtype(x.dtype).itemsize
    sub = 16 if itemsize <= 2 else 8       # sublane packing: bf16 16 rows, f32 8 rows
    total_bytes = B * S2 * D2 * itemsize

    if total_bytes <= _TINY_BYTES:
        # Tiny problem: one fat block; per-grid-step overhead would dominate otherwise.
        grid = (1,)
        x_spec = pl.BlockSpec((B, S2, D2), lambda i: (0, 0, 0))
        pe_spec = pl.BlockSpec((S2, D2), lambda i: (0, 0))
        o_spec = pl.BlockSpec((B, S2, D2), lambda i: (0, 0, 0))
        dims = ("arbitrary",)
    else:
        # Bandwidth path: tile along the sequence axis, ~_TARGET_TILE_BYTES per x tile.
        row_bytes = D2 * itemsize
        target_rows = max(sub, _TARGET_TILE_BYTES // row_bytes)
        ts = min(S2, (target_rows // sub) * sub)
        if ts >= S2:
            ts = S2                         # full seq dim (always a legal block extent)
        grid = (B, pl.cdiv(S2, ts))
        x_spec = pl.BlockSpec((1, ts, D2), lambda b, s: (b, s, 0))
        pe_spec = pl.BlockSpec((ts, D2), lambda b, s: (s, 0))   # one pe tile resident
        o_spec = pl.BlockSpec((1, ts, D2), lambda b, s: (b, s, 0))
        dims = ("parallel", "parallel")     # both axes independent -> feeds both v7x TCs

    out = pl.pallas_call(
        _pe_add_kernel,
        out_shape=jax.ShapeDtypeStruct((B, S2, D2), x.dtype),
        grid_spec=pltpu.PrefetchScalarGridSpec(
            num_scalar_prefetch=0,
            grid=grid,
            in_specs=[x_spec, pe_spec],
            out_specs=o_spec,
        ),
        compiler_params=pltpu.CompilerParams(dimension_semantics=dims),
        # Note: when this op sits inside a larger graph and the caller donates x,
        # add input_output_aliases={0: 0} to reuse x's HBM buffer for the output.
    )(x2, pe2)

    return out.reshape(B, S, D)


if __name__ == "__main__":
    # Small shapes consistent with the module's forward: [batch, seq, d_model]
    B, S, D = 2, 8, 32
    max_len = 64
    dropout_p = 0.1  # unused in eval mode (identity)

    key = jax.random.PRNGKey(0)
    x = jax.random.normal(key, (B, S, D), dtype=jnp.float32)

    pe = build_pe_table(max_len, D, dtype=jnp.float32)

    # Reference in plain JAX (computed before the kernel call).
    ref = x + pe[None, :S, :]

    out = positional_encoding_forward(x, pe)
    out = jax.block_until_ready(out)

    assert out.shape == (B, S, D)
    assert jnp.allclose(out, ref, atol=1e-6), "mismatch vs reference"

    print("KERNEL_OK")
</pallas_src>

<mosaic_0001>
module attributes {stable_mosaic.version = 11 : i64} {
  func.func @_pe_add_kernel(%arg0: i32, %arg1: memref<2x2x128xf32, #tpu.memory_space<vmem>>, %arg2: memref<2x128xf32, #tpu.memory_space<vmem>>, %arg3: memref<2x2x128xf32, #tpu.memory_space<vmem>>) attributes {dimension_semantics = [#tpu.dimension_semantics<arbitrary>], iteration_bounds = array<i64: 1>, scalar_prefetch = 0 : i64, scratch_operands = 0 : i64, tpu.core_type = #tpu.core_type<tc>, window_params = [{pipeline_mode = #tpu.pipeline_mode<synchronous>, transform_indices = @transform_0, window_bounds = array<i64: 2, 2, 128>}, {pipeline_mode = #tpu.pipeline_mode<synchronous>, transform_indices = @transform_1, window_bounds = array<i64: 2, 128>}, {pipeline_mode = #tpu.pipeline_mode<synchronous>, transform_indices = @transform_2, window_bounds = array<i64: 2, 2, 128>}]} {
    %c0 = arith.constant 0 : index
    %c0_0 = arith.constant 0 : index
    %c0_1 = arith.constant 0 : index
    %0 = vector.load %arg1[%c0, %c0_0, %c0_1] : memref<2x2x128xf32, #tpu.memory_space<vmem>>, vector<2x2x128xf32>
    %c0_2 = arith.constant 0 : index
    %c0_3 = arith.constant 0 : index
    %1 = vector.load %arg2[%c0_2, %c0_3] : memref<2x128xf32, #tpu.memory_space<vmem>>, vector<2x128xf32>
    %2 = vector.shape_cast %1 : vector<2x128xf32> to vector<1x2x128xf32>
    %3 = vector.broadcast %2 : vector<1x2x128xf32> to vector<2x2x128xf32>
    %4 = arith.addf %0, %3 : vector<2x2x128xf32>
    %c0_4 = arith.constant 0 : index
    %c0_5 = arith.constant 0 : index
    %c0_6 = arith.constant 0 : index
    %5 = vector.load %arg3[%c0_4, %c0_5, %c0_6] : memref<2x2x128xf32, #tpu.memory_space<vmem>>, vector<2x2x128xf32>
    tpu.vector_store %arg3[%c0_4, %c0_5, %c0_6], %4 {strides = array<i32>} : memref<2x2x128xf32, #tpu.memory_space<vmem>>, vector<2x2x128xf32>,
    return
  }
  func.func @transform_0(%arg0: i32) -> (i32, i32, i32) {
    %c0_i32 = arith.constant 0 : i32
    %c0_i32_0 = arith.constant 0 : i32
    %c0_i32_1 = arith.constant 0 : i32
    %c0_i32_2 = arith.constant 0 : i32
    return %c0_i32, %c0_i32_0, %c0_i32_1 : i32, i32, i32
  }
  func.func @transform_1(%arg0: i32) -> (i32, i32) {
    %c0_i32 = arith.constant 0 : i32
    %c0_i32_0 = arith.constant 0 : i32
    %c0_i32_1 = arith.constant 0 : i32
    return %c0_i32, %c0_i32_0 : i32, i32
  }
  func.func @transform_2(%arg0: i32) -> (i32, i32, i32) {
    %c0_i32 = arith.constant 0 : i32
    %c0_i32_0 = arith.constant 0 : i32
    %c0_i32_1 = arith.constant 0 : i32
    %c0_i32_2 = arith.constant 0 : i32
    return %c0_i32, %c0_i32_0, %c0_i32_1 : i32, i32, i32
  }
}

</mosaic_0001>

<llo_original>
// kernel: tpu_custom_call.1
$region0: #{tpu_custom_call.1}
  #allocation0 [shape = 'u32[]', space=smem, size = 0x4, offset = 0x4, fixed_abs, tag = 'smem constant byte address 0x4 - core index']
  #allocation1 [shape = 'u32[72,128]{1,0:T(1,128)}', space=vmem, size = 0x9000, scoped, tag = 'internal scratch']
  %s0 = inlined_call_operand.hbm [shape: f32[2,2,128], index: 0, kind: input, shape index: {}]
  %s1 = inlined_call_operand.hbm [shape: f32[2,128], index: 1, kind: input, shape index: {}]
  %s2 = inlined_call_operand.hbm [shape: f32[2,2,128], index: 2, kind: output, shape index: {}]
  %s3 = sld [smem:[#allocation0]]
  $region26: #{tpu_custom_call.1} parent=0
    _
  %s5 = ssub.s32 1, %s3
  %s6 = scalar_select 0, %s5, %s3
  $region1: #{tpu_custom_call.1} parent=0
    #allocation2 [shape = 'u8[2048]{0}', space=vmem, size = 0x800, scoped, tag = 'input window, operand 0, single buffered']
    #allocation3 [shape = 's32[1]{0}', space=sflag, size = 0x4, scoped, tag = 'scoped memory for tpu_custom_call.1']
    #allocation4 [shape = 's32[1]{0}', space=sflag, size = 0x4, scoped, tag = 'scoped memory for tpu_custom_call.1']
    #allocation5 [shape = 'u8[1024]{0}', space=vmem, size = 0x400, scoped, tag = 'input window, operand 1, single buffered']
    #allocation6 [shape = 's32[1]{0}', space=sflag, size = 0x4, scoped, tag = 'scoped memory for tpu_custom_call.1']
    #allocation7 [shape = 'u8[2048]{0}', space=vmem, size = 0x800, scoped, tag = 'output window, operand 0, single buffered']
    %7 = vsyncpa [#allocation3], 0
    %8 = vsyncpa [#allocation6], 0
    %9 = vsyncpa [#allocation4], 0
    // Predicated region
    $region2: #{tpu_custom_call.1} parent=1 // pred_check
      _
    $region3: #{tpu_custom_call.1} parent=1 // pred_check_branch
      %11 = sbr.rel (0) target = $region5
    $region4: #{tpu_custom_call.1} parent=1 // pred_region
      %13 = vsyncadd [#allocation3], 0
      %s14 = sshll.u32 %s0, 4
      %s15 = int_to_ptr.hbm [resolvable:$true] %s14
      %s16 = sshll.u32 [#allocation2], 4
      %s17 = int_to_ptr.vmem [resolvable:$true] %s16
      %22 = dma.hbm_to_vmem [thread:$0]  %s15, 64, %s17, [#allocation3], 32, 32, 2
    $region5: #{tpu_custom_call.1} parent=1 // pred_fallthru
      _
    // Predicated region
    $region6: #{tpu_custom_call.1} parent=1 // pred_check
      _
    $region7: #{tpu_custom_call.1} parent=1 // pred_check_branch
      %24 = sbr.rel (0) target = $region9
    $region8: #{tpu_custom_call.1} parent=1 // pred_region
      %26 = vsyncadd [#allocation6], 0
      %s28 = sshll.u32 %s1, 4
      %s29 = int_to_ptr.hbm [resolvable:$true] %s28
      %s30 = sshll.u32 [#allocation5], 4
      %s31 = int_to_ptr.vmem [resolvable:$true] %s30
      %33 = dma.hbm_to_vmem [thread:$0]  %s29, 32, %s31, [#allocation6]
    $region9: #{tpu_custom_call.1} parent=1 // pred_fallthru
      _
    // Predicated region
    $region10: #{tpu_custom_call.1} parent=1 // pred_check
      _
    $region11: #{tpu_custom_call.1} parent=1 // pred_check_branch
      %35 = sbr.rel (0) target = $region13
    $region12: #{tpu_custom_call.1} parent=1 // pred_region
      %37 = dma.done [#allocation3], 64
    $region13: #{tpu_custom_call.1} parent=1 // pred_fallthru
      _
    // Predicated region
    $region14: #{tpu_custom_call.1} parent=1 // pred_check
      _
    $region15: #{tpu_custom_call.1} parent=1 // pred_check_branch
      %39 = sbr.rel (0) target = $region17
    $region16: #{tpu_custom_call.1} parent=1 // pred_region
      %41 = dma.done [#allocation6], 32
    $region17: #{tpu_custom_call.1} parent=1 // pred_fallthru
      _
    %v42 = vld [vmem:[#allocation2] sm:$0x3]
    %v43 = vld [vmem:[#allocation2 + $0x2] sm:$0x3]
    %v44 = vld [vmem:[#allocation5] sm:$0x3]
    %v45 = vadd.f32 %v42, %v44
    %v46 = vadd.f32 %v43, %v44
    %47 = vst [vmem:[#allocation7] sm:$0x3] %v45
    %48 = vst [vmem:[#allocation7 + $0x2] sm:$0x3] %v46
    // Predicated region
    $region18: #{tpu_custom_call.1} parent=1 // pred_check
      _
    $region19: #{tpu_custom_call.1} parent=1 // pred_check_branch
      %50 = sbr.rel (0) target = $region21
    $region20: #{tpu_custom_call.1} parent=1 // pred_region
      %52 = vsyncadd [#allocation4], 0
      %s53 = sshll.u32 [#allocation7], 4
      %s54 = int_to_ptr.vmem [resolvable:$true] %s53
      %s55 = sshll.u32 %s2, 4
      %s56 = int_to_ptr.hbm [resolvable:$true] %s55
      %61 = dma.vmem_to_hbm [thread:$0]  %s54, 64, %s56, [#allocation4], 32, 32, 2
    $region21: #{tpu_custom_call.1} parent=1 // pred_fallthru
      _
    // Predicated region
    $region22: #{tpu_custom_call.1} parent=1 // pred_check
      _
    $region23: #{tpu_custom_call.1} parent=1 // pred_check_branch
      %63 = sbr.rel (0) target = $region25
    $region24: #{tpu_custom_call.1} parent=1 // pred_region
      %65 = dma.done [#allocation4], 64
    $region25: #{tpu_custom_call.1} parent=1 // pred_fallthru
      _
    %66 = vsyncpa [#allocation3], 1
    %67 = vsyncpa [#allocation6], 1
    %68 = vsyncpa [#allocation4], 1

</llo_original>
